<compile_context>
chip_gen: v6e
topology: v6e:2x2x1
jax: 0.10.0
libtpu: 0.0.40
codegen_flags: <defaults>
</compile_context>

<pallas_src>
import functools

import jax
import jax.numpy as jnp
from jax.experimental import pallas as pl
from jax.experimental.pallas import tpu as pltpu


def _round_up(x, m):
    return ((x + m - 1) // m) * m


def _vmem_capacity_bytes():
    try:
        return int(pltpu.get_tpu_info().vmem_capacity_bytes)
    except Exception:
        return 64 * 1024 * 1024           # conservative: v7x per-core VMEM


def _clamp_vmem(need_bytes, headroom=4 << 20):
    cap = _vmem_capacity_bytes()
    return int(max(min(int(need_bytes), cap - headroom), 32 * 1024 * 1024))


# ----------------------------------------------------------------------------
# Folded-taps path (small Cin): one GEMM + BN + LeakyReLU per row tile.
# ----------------------------------------------------------------------------
def _gemm_bn_lrelu_kernel(x_ref, w_ref, s_ref, b_ref, o_ref, *, slope):
    """x_ref: (rows, Kc_pad) patches; w_ref: (Kc_pad, Cout_pad);
    s_ref/b_ref: (1, Cout_pad) folded BN scale/bias; o_ref: (rows, Cout_pad)."""
    acc = jnp.dot(x_ref[...], w_ref[...], preferred_element_type=jnp.float32)
    y = acc * s_ref[...] + b_ref[...]
    o_ref[...] = jnp.where(y > 0, y, slope * y).astype(o_ref.dtype)


def _forward_folded(x_nchw, w_oihw, scale, bias, *, K, pad, dil, slope,
                    Hout, Wout, compute_dtype, out_dtype, row_target=1024):
    N, Cin, H, W = x_nchw.shape
    Cout = w_oihw.shape[0]

    Kc = K * K * Cin                       # folded contraction depth
    Kc_p = _round_up(Kc, 128)              # lane-dense
    Cout_p = _round_up(Cout, 128)

    R = Hout * Wout                        # flattened output rows per image
    rows = min(_round_up(R, 8), _round_up(row_target, 8))
    R_pad = _round_up(R, rows)
    HT = R_pad // rows

    # ---- wrapper-side layout (fuses into one pad/concat/transpose fusion) ---
    x = jnp.transpose(x_nchw, (0, 2, 3, 1))                       # NHWC
    xp = jnp.pad(x, ((0, 0), (pad, pad), (pad, pad), (0, 0)))     # spatial pad
    taps = [xp[:, kh * dil:kh * dil + Hout, kw * dil:kw * dil + Wout, :]
            for kh in range(K) for kw in range(K)]
    patches = jnp.concatenate(taps, axis=-1)                      # (N,Ho,Wo,Kc)
    patches = patches.reshape(N, R, Kc)
    patches = jnp.pad(patches, ((0, 0), (0, R_pad - R), (0, Kc_p - Kc)))
    patches = patches.astype(compute_dtype)

    # (Cout,Cin,K,K) -> (K,K,Cin,Cout) -> (Kc,Cout); matches tap concat order.
    wmat = jnp.transpose(w_oihw, (2, 3, 1, 0)).reshape(Kc, Cout)
    wmat = jnp.pad(wmat, ((0, Kc_p - Kc), (0, Cout_p - Cout))).astype(compute_dtype)

    scale_p = jnp.pad(scale, (0, Cout_p - Cout)).reshape(1, Cout_p)
    bias_p = jnp.pad(bias, (0, Cout_p - Cout)).reshape(1, Cout_p)

    in_item = jnp.dtype(compute_dtype).itemsize
    out_item = jnp.dtype(out_dtype).itemsize
    need = (2 * rows * Kc_p * in_item          # double-buffered input tile
            + 2 * Kc_p * Cout_p * in_item      # weights
            + 4 * 2 * Cout_p * 4               # scale / bias
            + 2 * rows * Cout_p * out_item     # output tile
            + rows * Cout_p * 4                # matmul result staging
            + (2 << 20))
    vmem_limit = _clamp_vmem(need)

    kernel = functools.partial(_gemm_bn_lrelu_kernel, slope=slope)

    out_flat = pl.pallas_call(
        kernel,
        out_shape=jax.ShapeDtypeStruct((N, R_pad, Cout_p), out_dtype),
        grid=(N, HT),
        in_specs=[
            pl.BlockSpec((None, rows, Kc_p), lambda n, t: (n, t, 0)),
            pl.BlockSpec((Kc_p, Cout_p), lambda n, t: (0, 0)),
            pl.BlockSpec((1, Cout_p), lambda n, t: (0, 0)),
            pl.BlockSpec((1, Cout_p), lambda n, t: (0, 0)),
        ],
        out_specs=pl.BlockSpec((None, rows, Cout_p), lambda n, t: (n, t, 0)),
        compiler_params=pltpu.CompilerParams(
            dimension_semantics=("parallel", "parallel"),
            vmem_limit_bytes=vmem_limit),
    )(patches, wmat, scale_p, bias_p)

    out = out_flat[:, :R, :Cout].reshape(N, Hout, Wout, Cout)
    return jnp.transpose(out, (0, 3, 1, 2))


# ----------------------------------------------------------------------------
# Per-tap fallback (large Cin): K*K row-shifted matmuls, register accumulation.
# ----------------------------------------------------------------------------
def _per_tap_kernel(x_ref, w_ref, s_ref, b_ref, o_ref, *, K, dil, Wf, rows, slope):
    """x_ref: (X_rows, Cin_pad) flattened padded image; w_ref: (K*K, Cin_pad,
    Cout_pad); o_ref: (rows, Cout_pad)."""
    base = pl.program_id(1) * rows
    acc = None
    for kh in range(K):
        for kw in range(K):
            shift = dil * (kh * Wf + kw)
            off = base + shift
            if rows % 8 == 0 and shift % 8 == 0:
                off = pl.multiple_of(off, 8)       # aligned-load hint
            tap = jnp.dot(x_ref[pl.ds(off, rows), :], w_ref[kh * K + kw],
                          preferred_element_type=jnp.float32)
            acc = tap if acc is None else acc + tap   # value, not VMEM RMW
    y = acc * s_ref[...] + b_ref[...]
    o_ref[...] = jnp.where(y > 0, y, slope * y).astype(o_ref.dtype)


def _forward_per_tap(x_nchw, w_oihw, scale, bias, *, K, pad, dil, slope,
                     Hout, Wout, compute_dtype, out_dtype, row_target=512):
    N, Cin, H, W = x_nchw.shape
    Cout = w_oihw.shape[0]
    Hp, Wp = H + 2 * pad, W + 2 * pad

    # Pad the flattened row width so the kh row-stride (dil*Wf) is 8-aligned.
    Wf = Wp
    while (dil * Wf) % 8 != 0:
        Wf += 1

    Cin_p = _round_up(Cin, 128)
    Cout_p = _round_up(Cout, 128)

    TH = min(Hout, max(1, -(-row_target // Wf)))
    while TH < Hout and (TH * Wf) % 8 != 0:
        TH += 1
    HT = -(-Hout // TH)
    Hout_r = HT * TH
    rows = TH * Wf

    s_max = dil * (K - 1) * (Wf + 1)
    X_rows = _round_up(Hout_r * Wf + s_max, 8)

    x = jnp.transpose(x_nchw, (0, 2, 3, 1))
    xp = jnp.pad(x, ((0, 0), (pad, pad), (pad, pad + (Wf - Wp)), (0, Cin_p - Cin)))
    xf = xp.reshape(N, Hp * Wf, Cin_p)
    xf = jnp.pad(xf, ((0, 0), (0, X_rows - Hp * Wf), (0, 0))).astype(compute_dtype)

    wk = jnp.transpose(w_oihw, (2, 3, 1, 0)).reshape(K * K, Cin, Cout)
    wk = jnp.pad(wk, ((0, 0), (0, Cin_p - Cin), (0, Cout_p - Cout))).astype(compute_dtype)

    scale_p = jnp.pad(scale, (0, Cout_p - Cout)).reshape(1, Cout_p)
    bias_p = jnp.pad(bias, (0, Cout_p - Cout)).reshape(1, Cout_p)

    in_item = jnp.dtype(compute_dtype).itemsize
    out_item = jnp.dtype(out_dtype).itemsize
    need = (2 * X_rows * Cin_p * in_item
            + 2 * K * K * Cin_p * Cout_p * in_item
            + 2 * rows * Cout_p * out_item
            + rows * Cout_p * 4
            + (2 << 20))
    vmem_limit = _clamp_vmem(need)

    kernel = functools.partial(_per_tap_kernel, K=K, dil=dil, Wf=Wf,
                               rows=rows, slope=slope)

    out_flat = pl.pallas_call(
        kernel,
        out_shape=jax.ShapeDtypeStruct((N, Hout_r * Wf, Cout_p), out_dtype),
        grid=(N, HT),
        in_specs=[
            pl.BlockSpec((None, X_rows, Cin_p), lambda n, t: (n, 0, 0)),
            pl.BlockSpec((K * K, Cin_p, Cout_p), lambda n, t: (0, 0, 0)),
            pl.BlockSpec((1, Cout_p), lambda n, t: (0, 0)),
            pl.BlockSpec((1, Cout_p), lambda n, t: (0, 0)),
        ],
        out_specs=pl.BlockSpec((None, rows, Cout_p), lambda n, t: (n, t, 0)),
        compiler_params=pltpu.CompilerParams(
            dimension_semantics=("parallel", "parallel"),
            vmem_limit_bytes=vmem_limit),
    )(xf, wk, scale_p, bias_p)

    out = out_flat[:, :Hout * Wf, :].reshape(N, Hout, Wf, Cout_p)
    out = out[:, :, :Wout, :Cout]
    return jnp.transpose(out, (0, 3, 1, 2))


# ----------------------------------------------------------------------------
# Public entry point.
# ----------------------------------------------------------------------------
def conv_block_forward(x_nchw, w_oihw, b_conv, gamma, beta, run_mean, run_var,
                       *, pad, dil, eps=1e-5, slope=0.01,
                       compute_dtype=jnp.bfloat16, out_dtype=None,
                       force_per_tap=False):
    N, Cin, H, W = x_nchw.shape
    Cout, _, K, _ = w_oihw.shape

    Hout = H + 2 * pad - dil * (K - 1)            # stride 1
    Wout = W + 2 * pad - dil * (K - 1)
    assert Hout > 0 and Wout > 0, (Hout, Wout)

    if compute_dtype is None:
        compute_dtype = x_nchw.dtype
    if out_dtype is None:
        out_dtype = x_nchw.dtype

    # Fold conv bias + inference BatchNorm into per-channel scale/bias.
    scale = (gamma / jnp.sqrt(run_var + eps)).astype(jnp.float32)
    bias = ((b_conv - run_mean) * scale + beta).astype(jnp.float32)

    fold = (K * K * Cin <= 512) and not force_per_tap
    fwd = _forward_folded if fold else _forward_per_tap
    return fwd(x_nchw, w_oihw, scale, bias, K=K, pad=pad, dil=dil, slope=slope,
               Hout=Hout, Wout=Wout, compute_dtype=compute_dtype,
               out_dtype=out_dtype)


def _reference(x, w, b_conv, gamma, beta, run_mean, run_var, *, pad, dil,
               eps=1e-5, slope=0.01):
    y = jax.lax.conv_general_dilated(
        x, w, window_strides=(1, 1), padding=((pad, pad), (pad, pad)),
        rhs_dilation=(dil, dil),
        dimension_numbers=("NCHW", "OIHW", "NCHW"),
        precision=jax.lax.Precision.HIGHEST)
    y = y + b_conv[None, :, None, None]
    y = (y - run_mean[None, :, None, None]) / jnp.sqrt(
        run_var[None, :, None, None] + eps)
    y = y * gamma[None, :, None, None] + beta[None, :, None, None]
    return jnp.where(y > 0, y, slope * y)


if __name__ == "__main__":
    # ConvBlock(in_ch=4, out_ch=8, k_size=3, pad=2, dil=2)
    N, Cin, H, W = 2, 4, 16, 16
    Cout, K, pad, dil = 8, 3, 2, 2

    key = jax.random.PRNGKey(0)
    k0, k1, k2, k3, k4, k5, k6 = jax.random.split(key, 7)

    x = jax.random.normal(k0, (N, Cin, H, W), jnp.float32)
    w = jax.random.normal(k1, (Cout, Cin, K, K), jnp.float32) * 0.1
    b_conv = 0.1 * jax.random.normal(k2, (Cout,), jnp.float32)
    gamma = 1.0 + 0.1 * jax.random.normal(k3, (Cout,), jnp.float32)
    beta = 0.1 * jax.random.normal(k4, (Cout,), jnp.float32)
    run_mean = 0.1 * jax.random.normal(k5, (Cout,), jnp.float32)
    run_var = jax.random.uniform(k6, (Cout,), jnp.float32, 0.5, 1.5)

    ref = jax.block_until_ready(
        _reference(x, w, b_conv, gamma, beta, run_mean, run_var,
                   pad=pad, dil=dil))

    # 1) Default fast path: folded taps, bf16 MXU operands, f32 accumulate.
    fwd_bf16 = jax.jit(functools.partial(conv_block_forward, pad=pad, dil=dil))
    out_bf16 = jax.block_until_ready(
        fwd_bf16(x, w, b_conv, gamma, beta, run_mean, run_var))
    assert out_bf16.shape == ref.shape, (out_bf16.shape, ref.shape)
    err = float(jnp.max(jnp.abs(out_bf16 - ref)))
    assert jnp.allclose(out_bf16, ref, rtol=5e-2, atol=5e-2), err

    # 2) Folded path, f32 operands: bit-tight check.
    fwd_f32 = jax.jit(functools.partial(conv_block_forward, pad=pad, dil=dil,
                                        compute_dtype=jnp.float32))
    out_f32 = jax.block_until_ready(
        fwd_f32(x, w, b_conv, gamma, beta, run_mean, run_var))
    err = float(jnp.max(jnp.abs(out_f32 - ref)))
    assert jnp.allclose(out_f32, ref, rtol=1e-3, atol=1e-3), err

    # 3) Per-tap fallback path (large-Cin regime), f32, exercised for coverage.
    fwd_tap = jax.jit(functools.partial(conv_block_forward, pad=pad, dil=dil,
                                        compute_dtype=jnp.float32,
                                        force_per_tap=True))
    out_tap = jax.block_until_ready(
        fwd_tap(x, w, b_conv, gamma, beta, run_mean, run_var))
    err = float(jnp.max(jnp.abs(out_tap - ref)))
    assert jnp.allclose(out_tap, ref, rtol=1e-3, atol=1e-3), err

    print("KERNEL_OK")
</pallas_src>

<mosaic_0001>
module attributes {stable_mosaic.version = 11 : i64} {
  func.func @_gemm_bn_lrelu_kernel(%arg0: i32, %arg1: i32, %arg2: memref<1x256x128xbf16, #tpu.memory_space<vmem>>, %arg3: memref<128x128xbf16, #tpu.memory_space<vmem>>, %arg4: memref<1x128xf32, #tpu.memory_space<vmem>>, %arg5: memref<1x128xf32, #tpu.memory_space<vmem>>, %arg6: memref<1x256x128xf32, #tpu.memory_space<vmem>>) attributes {dimension_semantics = [#tpu.dimension_semantics<parallel>, #tpu.dimension_semantics<parallel>], iteration_bounds = array<i64: 2, 1>, scalar_prefetch = 0 : i64, scratch_operands = 0 : i64, tpu.core_type = #tpu.core_type<tc>, window_params = [{transform_indices = @transform_0, window_bounds = array<i64: 1, 256, 128>}, {pipeline_mode = #tpu.pipeline_mode<synchronous>, transform_indices = @transform_1, window_bounds = array<i64: 128, 128>}, {pipeline_mode = #tpu.pipeline_mode<synchronous>, transform_indices = @transform_2, window_bounds = array<i64: 1, 128>}, {pipeline_mode = #tpu.pipeline_mode<synchronous>, transform_indices = @transform_3, window_bounds = array<i64: 1, 128>}, {transform_indices = @transform_4, window_bounds = array<i64: 1, 256, 128>}]} {
    %c0 = arith.constant 0 : index
    %c0_0 = arith.constant 0 : index
    %c0_1 = arith.constant 0 : index
    %0 = vector.load %arg2[%c0, %c0_0, %c0_1] : memref<1x256x128xbf16, #tpu.memory_space<vmem>>, vector<1x256x128xbf16>
    %1 = vector.shape_cast %0 : vector<1x256x128xbf16> to vector<256x128xbf16>
    %c0_2 = arith.constant 0 : index
    %c0_3 = arith.constant 0 : index
    %2 = vector.load %arg3[%c0_2, %c0_3] : memref<128x128xbf16, #tpu.memory_space<vmem>>, vector<128x128xbf16>
    %cst = arith.constant dense<0.000000e+00> : vector<256x128xf32>
    %3 = tpu.matmul %1, %2, %cst {dimension_numbers = #tpu.dot_dimension_numbers<[1], [0], [0], [1], [0, 0, 1, 1], [], []>} : vector<256x128xbf16>, vector<128x128xbf16>, vector<256x128xf32> -> vector<256x128xf32>
    %c0_4 = arith.constant 0 : index
    %c0_5 = arith.constant 0 : index
    %4 = vector.load %arg4[%c0_4, %c0_5] : memref<1x128xf32, #tpu.memory_space<vmem>>, vector<1x128xf32>
    %5 = vector.broadcast %4 : vector<1x128xf32> to vector<256x128xf32>
    %6 = arith.mulf %3, %5 : vector<256x128xf32>
    %c0_6 = arith.constant 0 : index
    %c0_7 = arith.constant 0 : index
    %7 = vector.load %arg5[%c0_6, %c0_7] : memref<1x128xf32, #tpu.memory_space<vmem>>, vector<1x128xf32>
    %8 = vector.broadcast %7 : vector<1x128xf32> to vector<256x128xf32>
    %9 = arith.addf %6, %8 : vector<256x128xf32>
    %cst_8 = arith.constant 0.000000e+00 : f32
    %10 = vector.broadcast %cst_8 : f32 to vector<256x128xf32>
    %11 = arith.cmpf ogt, %9, %10 : vector<256x128xf32>
    %cst_9 = arith.constant 0.00999999977 : f32
    %12 = vector.broadcast %cst_9 : f32 to vector<256x128xf32>
    %13 = arith.mulf %12, %9 : vector<256x128xf32>
    %14 = arith.select %11, %9, %13 : vector<256x128xi1>, vector<256x128xf32>
    %c0_10 = arith.constant 0 : index
    %c0_11 = arith.constant 0 : index
    %c0_12 = arith.constant 0 : index
    %15 = vector.load %arg6[%c0_10, %c0_11, %c0_12] : memref<1x256x128xf32, #tpu.memory_space<vmem>>, vector<1x256x128xf32>
    %16 = vector.shape_cast %15 : vector<1x256x128xf32> to vector<256x128xf32>
    %17 = vector.shape_cast %14 : vector<256x128xf32> to vector<1x256x128xf32>
    tpu.vector_store %arg6[%c0_10, %c0_11, %c0_12], %17 {strides = array<i32>} : memref<1x256x128xf32, #tpu.memory_space<vmem>>, vector<1x256x128xf32>,
    return
  }
  func.func @transform_0(%arg0: i32, %arg1: i32) -> (i32, i32, i32) {
    %c0_i32 = arith.constant 0 : i32
    %c0_i32_0 = arith.constant 0 : i32
    return %arg0, %arg1, %c0_i32 : i32, i32, i32
  }
  func.func @transform_1(%arg0: i32, %arg1: i32) -> (i32, i32) {
    %c0_i32 = arith.constant 0 : i32
    %c0_i32_0 = arith.constant 0 : i32
    %c0_i32_1 = arith.constant 0 : i32
    return %c0_i32, %c0_i32_0 : i32, i32
  }
  func.func @transform_2(%arg0: i32, %arg1: i32) -> (i32, i32) {
    %c0_i32 = arith.constant 0 : i32
    %c0_i32_0 = arith.constant 0 : i32
    %c0_i32_1 = arith.constant 0 : i32
    return %c0_i32, %c0_i32_0 : i32, i32
  }
  func.func @transform_3(%arg0: i32, %arg1: i32) -> (i32, i32) {
    %c0_i32 = arith.constant 0 : i32
    %c0_i32_0 = arith.constant 0 : i32
    %c0_i32_1 = arith.constant 0 : i32
    return %c0_i32, %c0_i32_0 : i32, i32
  }
  func.func @transform_4(%arg0: i32, %arg1: i32) -> (i32, i32, i32) {
    %c0_i32 = arith.constant 0 : i32
    %c0_i32_0 = arith.constant 0 : i32
    return %arg0, %arg1, %c0_i32 : i32, i32, i32
  }
}

</mosaic_0001>

<llo_original>
// kernel: conv_block_forward.1
$region0: #{conv_block_forward.1}
  #allocation0 [shape = 'u32[]', space=smem, size = 0x4, offset = 0x4, fixed_abs, tag = 'smem constant byte address 0x4 - core index']
  #allocation1 [shape = 'u32[144,128]{1,0:T(1,128)}', space=vmem, size = 0x12000, scoped, tag = 'internal scratch']
  %s0 = inlined_call_operand.vmem [shape: bf16[2,256,128], index: 0, kind: input, shape index: {}]
  %s1 = inlined_call_operand.vmem [shape: bf16[128,128], index: 1, kind: input, shape index: {}]
  %s2 = inlined_call_operand.vmem [shape: f32[1,128], index: 2, kind: input, shape index: {}]
  %s3 = inlined_call_operand.vmem [shape: f32[1,128], index: 3, kind: input, shape index: {}]
  %s4 = inlined_call_operand.vmem [shape: f32[2,256,128], index: 4, kind: output, shape index: {}]
  %s5 = sld [smem:[#allocation0]]
  $region49: #{conv_block_forward.1} parent=0
    _
  %s7 = ssub.s32 1, %s5
  %s8 = scalar_select 0, %s7, %s5
  loop: start=0, step=1, limit=4
  $region2: #{conv_block_forward.1} parent=0 // loop_pre_header
    _
  $region3: #{conv_block_forward.1} parent=0 // loop_header
    %s10 = sphi 0, %s14
    %p11 = scmp.ge.s32.totalorder %s10, 4
    %s17 = sphi 0, %s29
    %s18 = sphi 0, %s25
    %s19 = sphi 0, %s17
    %s20 = sphi 0, %s18
    %s21 = sphi 0, %s19
    %s22 = sphi 0, %s20
    %s34 = sphi 0, %s36
    %s37 = sphi 0, %s34
    %s38 = sphi 0, %s37
    %s54 = sphi 0, %s38
    %s58 = sphi 0, %s58
    %s60 = sphi 0, %s58
    %s61 = sphi 0, %s60
    %s75 = sphi 0, %s61
    %s79 = sphi 0, %s79
    %s81 = sphi 0, %s79
    %s82 = sphi 0, %s81
    %s96 = sphi 0, %s82
    %s100 = sphi 0, %s100
    %s102 = sphi 0, %s100
    %s103 = sphi 0, %s102
    %s117 = sphi 0, %s103
    %s125 = sphi 0, %s127
    %s128 = sphi 0, %s125
    %s129 = sphi 0, %s128
    %s145 = sphi 0, %s129
  $region4: #{conv_block_forward.1} parent=0 // loop_header_branch
    %13 = sbr.rel (%p11) target = $region8
  $region5: #{conv_block_forward.1} parent=0 // loop_body
    %s15 = ssub.s32 %s10, 1
    %s16 = ssub.s32 %s10, 2
    %s23 = sadd.s32 1, %s18
    %p24 = scmp.ge.s32.totalorder %s23, 1
    %s25 = scalar_select %p24, 0, %s23
    %s26 = sadd.s32 1, %s17
    %s27 = scalar_select %p24, %s26, %s17
    %p28 = scmp.ge.s32.totalorder %s27, 2
    %s29 = scalar_select %p28, 0, %s27
    %s30 = ssub.s32 %s17, %s29
    %s31 = ssub.s32 %s18, %s25
    %s32 = sor.u32 %s30, %s31
    %p33 = scmp.eq.s32.totalorder %s32, 0
    %s35 = sadd.s32 %s34, 1
    %s36 = scalar_select %p33, %s34, %s35
    %p39 = pneg %p33
    %p40 = scmp.eq.s32.totalorder %s10, 1
    %p41 = por %p39, %p40
    %p42 = scmp.ne.s32.totalorder %s34, %s37
    %p43 = scmp.eq.s32.totalorder %s10, 0
    %p44 = por %p42, %p43
    %p45 = scmp.ne.s32.totalorder %s34, %s37
    %p46 = scmp.eq.s32.totalorder %s15, 1
    %p47 = por %p45, %p46
    %p48 = scmp.ne.s32.totalorder %s37, %s38
    %p49 = scmp.eq.s32.totalorder %s15, 0
    %p50 = por %p48, %p49
    %p51 = scmp.ne.s32.totalorder %s37, %s38
    %p52 = scmp.eq.s32.totalorder %s16, 1
    %p53 = por %p51, %p52
    %p55 = scmp.ne.s32.totalorder %s38, %s54
    %p56 = scmp.eq.s32.totalorder %s16, 0
    %p57 = por %p55, %p56
    %s59 = sadd.s32 %s58, 1
    %p62 = scmp.eq.s32.totalorder %s10, 1
    %p63 = scmp.ne.s32.totalorder %s58, %s60
    %p64 = scmp.eq.s32.totalorder %s10, 0
    %p65 = por %p63, %p64
    %p66 = scmp.ne.s32.totalorder %s58, %s60
    %p67 = scmp.eq.s32.totalorder %s15, 1
    %p68 = por %p66, %p67
    %p69 = scmp.ne.s32.totalorder %s60, %s61
    %p70 = scmp.eq.s32.totalorder %s15, 0
    %p71 = por %p69, %p70
    %p72 = scmp.ne.s32.totalorder %s60, %s61
    %p73 = scmp.eq.s32.totalorder %s16, 1
    %p74 = por %p72, %p73
    %p76 = scmp.ne.s32.totalorder %s61, %s75
    %p77 = scmp.eq.s32.totalorder %s16, 0
    %p78 = por %p76, %p77
    %s80 = sadd.s32 %s79, 1
    %p83 = scmp.eq.s32.totalorder %s10, 1
    %p84 = scmp.ne.s32.totalorder %s79, %s81
    %p85 = scmp.eq.s32.totalorder %s10, 0
    %p86 = por %p84, %p85
    %p87 = scmp.ne.s32.totalorder %s79, %s81
    %p88 = scmp.eq.s32.totalorder %s15, 1
    %p89 = por %p87, %p88
    %p90 = scmp.ne.s32.totalorder %s81, %s82
    %p91 = scmp.eq.s32.totalorder %s15, 0
    %p92 = por %p90, %p91
    %p93 = scmp.ne.s32.totalorder %s81, %s82
    %p94 = scmp.eq.s32.totalorder %s16, 1
    %p95 = por %p93, %p94
    %p97 = scmp.ne.s32.totalorder %s82, %s96
    %p98 = scmp.eq.s32.totalorder %s16, 0
    %p99 = por %p97, %p98
    %s101 = sadd.s32 %s100, 1
    %p104 = scmp.eq.s32.totalorder %s10, 1
    %p105 = scmp.ne.s32.totalorder %s100, %s102
    %p106 = scmp.eq.s32.totalorder %s10, 0
    %p107 = por %p105, %p106
    %p108 = scmp.ne.s32.totalorder %s100, %s102
    %p109 = scmp.eq.s32.totalorder %s15, 1
    %p110 = por %p108, %p109
    %p111 = scmp.ne.s32.totalorder %s102, %s103
    %p112 = scmp.eq.s32.totalorder %s15, 0
    %p113 = por %p111, %p112
    %p114 = scmp.ne.s32.totalorder %s102, %s103
    %p115 = scmp.eq.s32.totalorder %s16, 1
    %p116 = por %p114, %p115
    %p118 = scmp.ne.s32.totalorder %s103, %s117
    %p119 = scmp.eq.s32.totalorder %s16, 0
    %p120 = por %p118, %p119
    %s121 = ssub.s32 %s17, %s29
    %s122 = ssub.s32 %s18, %s25
    %s123 = sor.u32 %s121, %s122
    %p124 = scmp.eq.s32.totalorder %s123, 0
    %s126 = sadd.s32 %s125, 1
    %s127 = scalar_select %p124, %s125, %s126
    %p130 = pneg %p124
    %p131 = scmp.eq.s32.totalorder %s10, 1
    %p132 = por %p130, %p131
    %p133 = scmp.ne.s32.totalorder %s125, %s128
    %p134 = scmp.eq.s32.totalorder %s10, 0
    %p135 = por %p133, %p134
    %p136 = scmp.ne.s32.totalorder %s125, %s128
    %p137 = scmp.eq.s32.totalorder %s15, 1
    %p138 = por %p136, %p137
    %p139 = scmp.ne.s32.totalorder %s128, %s129
    %p140 = scmp.eq.s32.totalorder %s15, 0
    %p141 = por %p139, %p140
    %p142 = scmp.ne.s32.totalorder %s128, %s129
    %p143 = scmp.eq.s32.totalorder %s16, 1
    %p144 = por %p142, %p143
    %p146 = scmp.ne.s32.totalorder %s129, %s145
    %p147 = scmp.eq.s32.totalorder %s16, 0
    %p148 = por %p146, %p147
    %p149 = scmp.le.s32.totalorder 1, %s10
    %p150 = scmp.lt.s32.totalorder %s10, 3
    %p151 = pnand %p149, %p150
    %p152 = pneg %p151
    // Predicated region
    $region9: #{conv_block_forward.1} parent=5 // pred_check
      _
    $region10: #{conv_block_forward.1} parent=5 // pred_check_branch
      %154 = sbr.rel (%p151) target = $region12
    $region11: #{conv_block_forward.1} parent=5 // pred_region
      %s155 = ssub.s32 %s10, 1
      // Predicated region
      $region13: #{conv_block_forward.1} parent=11 // pred_check
        %p156 = pneg %p71
      $region14: #{conv_block_forward.1} parent=11 // pred_check_branch
        %158 = sbr.rel (%p156) target = $region16
      $region15: #{conv_block_forward.1} parent=11 // pred_region
        _
      $region16: #{conv_block_forward.1} parent=11 // pred_fallthru
        _
      // Predicated region
      $region17: #{conv_block_forward.1} parent=11 // pred_check
        %p159 = pneg %p92
      $region18: #{conv_block_forward.1} parent=11 // pred_check_branch
        %161 = sbr.rel (%p159) target = $region20
      $region19: #{conv_block_forward.1} parent=11 // pred_region
        _
      $region20: #{conv_block_forward.1} parent=11 // pred_fallthru
        _
      // Predicated region
      $region21: #{conv_block_forward.1} parent=11 // pred_check
        %p162 = pneg %p113
      $region22: #{conv_block_forward.1} parent=11 // pred_check_branch
        %164 = sbr.rel (%p162) target = $region24
      $region23: #{conv_block_forward.1} parent=11 // pred_region
        _
      $region24: #{conv_block_forward.1} parent=11 // pred_fallthru
        _
    $region12: #{conv_block_forward.1} parent=5 // pred_fallthru
      _
    %p165 = scmp.lt.s32.totalorder %s10, 2
    // Predicated region
    $region25: #{conv_block_forward.1} parent=5 // pred_check
      %p166 = pneg %p165
    $region26: #{conv_block_forward.1} parent=5 // pred_check_branch
      %168 = sbr.rel (%p166) target = $region28
    $region27: #{conv_block_forward.1} parent=5 // pred_region
      // Predicated region
      $region29: #{conv_block_forward.1} parent=27 // pred_check
        %p169 = pneg %p44
      $region30: #{conv_block_forward.1} parent=27 // pred_check_branch
        %171 = sbr.rel (%p169) target = $region32
      $region31: #{conv_block_forward.1} parent=27 // pred_region
        %s172 = smul.u32 32, %s18
        %p173 = scmp.lt.s32.totalorder %s17, 1
        %s174 = scalar_select %p173, %s17, 1
        %p175 = scmp.lt.s32.totalorder %s172, 31
        %s176 = scalar_select %p175, %s172, 31
        %s177 = smul.addr %s174, 32
        %s178 = sadd.s32 %s176, %s177
        %s179 = smul.addr %s178, 4
        %s180 = scalar_lea.vmem %s0, %s179
        %s181 = smul.u32 32, %s18
      $region32: #{conv_block_forward.1} parent=27 // pred_fallthru
        _
    $region28: #{conv_block_forward.1} parent=5 // pred_fallthru
      _
    %p182 = scmp.le.s32.totalorder 1, %s10
    %p183 = scmp.lt.s32.totalorder %s10, 3
    %p184 = pnand %p182, %p183
    %p185 = pneg %p184
    // Predicated region
    $region33: #{conv_block_forward.1} parent=5 // pred_check
      _
    $region34: #{conv_block_forward.1} parent=5 // pred_check_branch
      %187 = sbr.rel (%p184) target = $region36
    $region35: #{conv_block_forward.1} parent=5 // pred_region
      %s188 = ssub.s32 %s10, 1
      %s189 = smul.u32 32, %s20
      %p190 = scmp.lt.s32.totalorder %s19, 1
      %s191 = scalar_select %p190, %s19, 1
      %p192 = scmp.lt.s32.totalorder %s189, 31
      %s193 = scalar_select %p192, %s189, 31
      %s194 = smul.addr %s191, 32
      %s195 = sadd.s32 %s193, %s194
      %s196 = smul.addr %s195, 4
      %s197 = scalar_lea.vmem %s0, %s196
      %p198 = pneg %p50
      %p199 = pneg %p47
      %p200 = pneg %p71
      %p201 = pneg %p68
      %p202 = pneg %p92
      %p203 = pneg %p89
      %p204 = pneg %p113
      %p205 = pneg %p110
      %p206 = pneg %p141
      %p207 = pneg %p138
      %s208 = smul.u32 32, %s20
      %p209 = scmp.lt.s32.totalorder %s19, 1
      %s210 = scalar_select %p209, %s19, 1
      %p211 = scmp.lt.s32.totalorder %s208, 31
      %s212 = scalar_select %p211, %s208, 31
      %s213 = smul.addr %s210, 32
      %s214 = sadd.s32 %s212, %s213
      %s215 = smul.addr %s214, 8
      %s216 = scalar_lea.vmem %s4, %s215
      %s217 = smul.u32 32, %s20
      %p218 = scmp.lt.s32.totalorder %s19, 1
      %s219 = scalar_select %p218, %s19, 1
      %p220 = scmp.lt.s32.totalorder %s217, 31
      %s221 = scalar_select %p220, %s217, 31
      %s222 = smul.addr %s219, 32
      %s223 = sadd.s32 %s221, %s222
      %s224 = smul.addr %s223, 4
      %s225 = scalar_lea.vmem %s0, %s224
      %s226 = smul.u32 32, %s20
      %s227 = smul.u32 32, %s20
      %p228 = scmp.lt.s32.totalorder %s19, 1
      %s229 = scalar_select %p228, %s19, 1
      %p230 = scmp.lt.s32.totalorder %s227, 31
      %s231 = scalar_select %p230, %s227, 31
      %s232 = smul.addr %s229, 32
      %s233 = sadd.s32 %s231, %s232
      %s234 = smul.addr %s233, 8
      %s235 = scalar_lea.vmem %s4, %s234
      %s236 = smul.u32 32, %s20
      %v238 = vld [vmem:[%s225] sm:$0xf]
      %v239 = vld [vmem:[%s225 + $0x4] sm:$0xf]
      %v240 = vld [vmem:[%s225 + $0x8] sm:$0xf]
      %v241 = vld [vmem:[%s225 + $0xc] sm:$0xf]
      %v242 = vld [vmem:[%s225 + $0x10] sm:$0xf]
      %v243 = vld [vmem:[%s225 + $0x14] sm:$0xf]
      %v244 = vld [vmem:[%s225 + $0x18] sm:$0xf]
      %v245 = vld [vmem:[%s225 + $0x1c] sm:$0xf]
      %v246 = vld [vmem:[%s225 + $0x20] sm:$0xf]
      %v247 = vld [vmem:[%s225 + $0x24] sm:$0xf]
      %v248 = vld [vmem:[%s225 + $0x28] sm:$0xf]
      %v249 = vld [vmem:[%s225 + $0x2c] sm:$0xf]
      %v250 = vld [vmem:[%s225 + $0x30] sm:$0xf]
      %v251 = vld [vmem:[%s225 + $0x34] sm:$0xf]
      %v252 = vld [vmem:[%s225 + $0x38] sm:$0xf]
      %v253 = vld [vmem:[%s225 + $0x3c] sm:$0xf]
      %v254 = vld [vmem:[%s225 + $0x40] sm:$0xf]
      %v255 = vld [vmem:[%s225 + $0x44] sm:$0xf]
      %v256 = vld [vmem:[%s225 + $0x48] sm:$0xf]
      %v257 = vld [vmem:[%s225 + $0x4c] sm:$0xf]
      %v258 = vld [vmem:[%s225 + $0x50] sm:$0xf]
      %v259 = vld [vmem:[%s225 + $0x54] sm:$0xf]
      %v260 = vld [vmem:[%s225 + $0x58] sm:$0xf]
      %v261 = vld [vmem:[%s225 + $0x5c] sm:$0xf]
      %v262 = vld [vmem:[%s225 + $0x60] sm:$0xf]
      %v263 = vld [vmem:[%s225 + $0x64] sm:$0xf]
      %v264 = vld [vmem:[%s225 + $0x68] sm:$0xf]
      %v265 = vld [vmem:[%s225 + $0x6c] sm:$0xf]
      %v266 = vld [vmem:[%s225 + $0x70] sm:$0xf]
      %v267 = vld [vmem:[%s225 + $0x74] sm:$0xf]
      %v268 = vld [vmem:[%s225 + $0x78] sm:$0xf]
      %v269 = vld [vmem:[%s225 + $0x7c] sm:$0xf]
      %v270 = vld [vmem:[%s1] sm:$0xf]
      %v271 = vld [vmem:[%s1 + $0x4] sm:$0xf]
      %v272 = vld [vmem:[%s1 + $0x8] sm:$0xf]
      %v273 = vld [vmem:[%s1 + $0xc] sm:$0xf]
      %v274 = vld [vmem:[%s1 + $0x10] sm:$0xf]
      %v275 = vld [vmem:[%s1 + $0x14] sm:$0xf]
      %v276 = vld [vmem:[%s1 + $0x18] sm:$0xf]
      %v277 = vld [vmem:[%s1 + $0x1c] sm:$0xf]
      %v278 = vld [vmem:[%s1 + $0x20] sm:$0xf]
      %v279 = vld [vmem:[%s1 + $0x24] sm:$0xf]
      %v280 = vld [vmem:[%s1 + $0x28] sm:$0xf]
      %v281 = vld [vmem:[%s1 + $0x2c] sm:$0xf]
      %v282 = vld [vmem:[%s1 + $0x30] sm:$0xf]
      %v283 = vld [vmem:[%s1 + $0x34] sm:$0xf]
      %v284 = vld [vmem:[%s1 + $0x38] sm:$0xf]
      %v285 = vld [vmem:[%s1 + $0x3c] sm:$0xf]
      %v318 = vunpack.c.l.b16 %v238
      %v319 = vunpack.c.l.b16 %v239
      %v320 = vunpack.c.l.b16 %v240
      %v321 = vunpack.c.l.b16 %v241
      %v322 = vunpack.c.l.b16 %v242
      %v323 = vunpack.c.l.b16 %v243
      %v324 = vunpack.c.l.b16 %v244
      %v325 = vunpack.c.l.b16 %v245
      %v326 = vunpack.c.l.b16 %v246
      %v327 = vunpack.c.l.b16 %v247
      %v328 = vunpack.c.l.b16 %v248
      %v329 = vunpack.c.l.b16 %v249
      %v330 = vunpack.c.l.b16 %v250
      %v331 = vunpack.c.l.b16 %v251
      %v332 = vunpack.c.l.b16 %v252
      %v333 = vunpack.c.l.b16 %v253
      %v334 = vunpack.c.l.b16 %v254
      %v335 = vunpack.c.l.b16 %v255
      %v336 = vunpack.c.l.b16 %v256
      %v337 = vunpack.c.l.b16 %v257
      %v338 = vunpack.c.l.b16 %v258
      %v339 = vunpack.c.l.b16 %v259
      %v340 = vunpack.c.l.b16 %v260
      %v341 = vunpack.c.l.b16 %v261
      %v342 = vunpack.c.l.b16 %v262
      %v343 = vunpack.c.l.b16 %v263
      %v344 = vunpack.c.l.b16 %v264
      %v345 = vunpack.c.l.b16 %v265
      %v346 = vunpack.c.l.b16 %v266
      %v347 = vunpack.c.l.b16 %v267
      %v348 = vunpack.c.l.b16 %v268
      %v349 = vunpack.c.l.b16 %v269
      %v350 = vpack.c.b16 %v319, %v318
      %v351 = vpack.c.b16 %v321, %v320
      %v352 = vpack.c.b16 %v323, %v322
      %v353 = vpack.c.b16 %v325, %v324
      %v354 = vpack.c.b16 %v327, %v326
      %v355 = vpack.c.b16 %v329, %v328
      %v356 = vpack.c.b16 %v331, %v330
      %v357 = vpack.c.b16 %v333, %v332
      %v358 = vpack.c.b16 %v335, %v334
      %v359 = vpack.c.b16 %v337, %v336
      %v360 = vpack.c.b16 %v339, %v338
      %v361 = vpack.c.b16 %v341, %v340
      %v362 = vpack.c.b16 %v343, %v342
      %v363 = vpack.c.b16 %v345, %v344
      %v364 = vpack.c.b16 %v347, %v346
      %v365 = vpack.c.b16 %v349, %v348
      %v398 = vunpack.c.l.b16 %v270
      %v399 = vunpack.c.l.b16 %v271
      %v400 = vunpack.c.l.b16 %v272
      %v401 = vunpack.c.l.b16 %v273
      %v402 = vunpack.c.l.b16 %v274
      %v403 = vunpack.c.l.b16 %v275
      %v404 = vunpack.c.l.b16 %v276
      %v405 = vunpack.c.l.b16 %v277
      %v406 = vunpack.c.l.b16 %v278
      %v407 = vunpack.c.l.b16 %v279
      %v408 = vunpack.c.l.b16 %v280
      %v409 = vunpack.c.l.b16 %v281
      %v410 = vunpack.c.l.b16 %v282
      %v411 = vunpack.c.l.b16 %v283
      %v412 = vunpack.c.l.b16 %v284
      %v413 = vunpack.c.l.b16 %v285
      %v414 = vpack.c.b16 %v399, %v398
      %v415 = vpack.c.b16 %v401, %v400
      %v416 = vpack.c.b16 %v403, %v402
      %v417 = vpack.c.b16 %v405, %v404
      %v418 = vpack.c.b16 %v407, %v406
      %v419 = vpack.c.b16 %v409, %v408
      %v420 = vpack.c.b16 %v411, %v410
      %v421 = vpack.c.b16 %v413, %v412
      %430 = vmatprep.subr.bf16.mxu0 0
      %431 = vmatpush1.bf16.msra.mxu0 %v421
      %432 = vmatprep.subr.bf16.mxu0 0
      %433 = vmatpush1.bf16.msra.mxu0 %v420
      %434 = vmatprep.subr.bf16.mxu0 0
      %435 = vmatpush1.bf16.msra.mxu0 %v419
      %436 = vmatprep.subr.bf16.mxu0 0
      %437 = vmatpush1.bf16.msra.mxu0 %v418
      %438 = vmatprep.subr.bf16.mxu0 0
      %439 = vmatpush1.bf16.msra.mxu0 %v417
      %440 = vmatprep.subr.bf16.mxu0 0
      %441 = vmatpush1.bf16.msra.mxu0 %v416
      %442 = vmatprep.subr.bf16.mxu0 0
      %443 = vmatpush1.bf16.msra.mxu0 %v415
      %444 = vmatprep.subr.bf16.mxu0 0
      %445 = vmatpush1.bf16.msra.mxu0 %v414
      %446 = vmatprep.subr.bf16.mxu0 0
      %447 = vmatpush2.bf16.msra.mxu0 0
      %448 = vmatprep.subr.bf16.mxu0 0
      %449 = vmatpush2.bf16.msra.mxu0 0
      %450 = vmatprep.subr.bf16.mxu0 0
      %451 = vmatpush2.bf16.msra.mxu0 0
      %452 = vmatprep.subr.bf16.mxu0 0
      %453 = vmatpush2.bf16.msra.mxu0 0
      %454 = vmatprep.subr.bf16.mxu0 0
      %455 = vmatpush2.bf16.msra.mxu0 0
      %456 = vmatprep.subr.bf16.mxu0 0
      %457 = vmatpush2.bf16.msra.mxu0 0
      %458 = vmatprep.subr.bf16.mxu0 0
      %459 = vmatpush2.bf16.msra.mxu0 0
      %460 = vmatprep.subr.bf16.mxu0 0
      %461 = vmatpush2.bf16.msra.mxu0 0
      %462 = vmatprep.mubr.bf16.mxu0 0
      %463 = vmatmul.mubr.bf16.gmra.mxu0 %v350
      %v464 = vpop.f32.mrf.mxu0
      %v465 = vadd.f32 0.0, %v464
      %v466 = vpop.f32.mrf.mxu0
      %v467 = vpop.f32.mrf.mxu0
      %v468 = vadd.f32 0.0, %v467
      %v469 = vpop.f32.mrf.mxu0
      %470 = vmatprep.mubr.bf16.mxu0 0
      %471 = vmatmul.mubr.bf16.gmra.mxu0 %v351
      %v472 = vpop.f32.mrf.mxu0
      %v473 = vadd.f32 0.0, %v472
      %v474 = vpop.f32.mrf.mxu0
      %v475 = vpop.f32.mrf.mxu0
      %v476 = vadd.f32 0.0, %v475
      %v477 = vpop.f32.mrf.mxu0
      %478 = vmatprep.mubr.bf16.mxu0 0
      %479 = vmatmul.mubr.bf16.gmra.mxu0 %v352
      %v480 = vpop.f32.mrf.mxu0
      %v481 = vadd.f32 0.0, %v480
      %v482 = vpop.f32.mrf.mxu0
      %v483 = vpop.f32.mrf.mxu0
      %v484 = vadd.f32 0.0, %v483
      %v485 = vpop.f32.mrf.mxu0
      %486 = vmatprep.mubr.bf16.mxu0 0
      %487 = vmatmul.mubr.bf16.gmra.mxu0 %v353
      %v488 = vpop.f32.mrf.mxu0
      %v489 = vadd.f32 0.0, %v488
      %v490 = vpop.f32.mrf.mxu0
      %v491 = vpop.f32.mrf.mxu0
      %v492 = vadd.f32 0.0, %v491
      %v493 = vpop.f32.mrf.mxu0
      %494 = vmatprep.mubr.bf16.mxu0 0
      %495 = vmatmul.mubr.bf16.gmra.mxu0 %v354
      %v496 = vpop.f32.mrf.mxu0
      %v497 = vadd.f32 0.0, %v496
      %v498 = vpop.f32.mrf.mxu0
      %v499 = vpop.f32.mrf.mxu0
      %v500 = vadd.f32 0.0, %v499
      %v501 = vpop.f32.mrf.mxu0
      %502 = vmatprep.mubr.bf16.mxu0 0
      %503 = vmatmul.mubr.bf16.gmra.mxu0 %v355
      %v504 = vpop.f32.mrf.mxu0
      %v505 = vadd.f32 0.0, %v504
      %v506 = vpop.f32.mrf.mxu0
      %v507 = vpop.f32.mrf.mxu0
      %v508 = vadd.f32 0.0, %v507
      %v509 = vpop.f32.mrf.mxu0
      %510 = vmatprep.mubr.bf16.mxu0 0
      %511 = vmatmul.mubr.bf16.gmra.mxu0 %v356
      %v512 = vpop.f32.mrf.mxu0
      %v513 = vadd.f32 0.0, %v512
      %v514 = vpop.f32.mrf.mxu0
      %v515 = vpop.f32.mrf.mxu0
      %v516 = vadd.f32 0.0, %v515
      %v517 = vpop.f32.mrf.mxu0
      %518 = vmatprep.mubr.bf16.mxu0 0
      %519 = vmatmul.mubr.bf16.gmra.mxu0 %v357
      %v520 = vpop.f32.mrf.mxu0
      %v521 = vadd.f32 0.0, %v520
      %v522 = vpop.f32.mrf.mxu0
      %v523 = vpop.f32.mrf.mxu0
      %v524 = vadd.f32 0.0, %v523
      %v525 = vpop.f32.mrf.mxu0
      %526 = vmatprep.mubr.bf16.mxu0 0
      %527 = vmatmul.mubr.bf16.gmra.mxu0 %v358
      %v528 = vpop.f32.mrf.mxu0
      %v529 = vadd.f32 0.0, %v528
      %v530 = vpop.f32.mrf.mxu0
      %v531 = vpop.f32.mrf.mxu0
      %v532 = vadd.f32 0.0, %v531
      %v533 = vpop.f32.mrf.mxu0
      %534 = vmatprep.mubr.bf16.mxu0 0
      %535 = vmatmul.mubr.bf16.gmra.mxu0 %v359
      %v536 = vpop.f32.mrf.mxu0
      %v537 = vadd.f32 0.0, %v536
      %v538 = vpop.f32.mrf.mxu0
      %v539 = vpop.f32.mrf.mxu0
      %v540 = vadd.f32 0.0, %v539
      %v541 = vpop.f32.mrf.mxu0
      %542 = vmatprep.mubr.bf16.mxu0 0
      %543 = vmatmul.mubr.bf16.gmra.mxu0 %v360
      %v544 = vpop.f32.mrf.mxu0
      %v545 = vadd.f32 0.0, %v544
      %v546 = vpop.f32.mrf.mxu0
      %v547 = vpop.f32.mrf.mxu0
      %v548 = vadd.f32 0.0, %v547
      %v549 = vpop.f32.mrf.mxu0
      %550 = vmatprep.mubr.bf16.mxu0 0
      %551 = vmatmul.mubr.bf16.gmra.mxu0 %v361
      %v552 = vpop.f32.mrf.mxu0
      %v553 = vadd.f32 0.0, %v552
      %v554 = vpop.f32.mrf.mxu0
      %v555 = vpop.f32.mrf.mxu0
      %v556 = vadd.f32 0.0, %v555
      %v557 = vpop.f32.mrf.mxu0
      %558 = vmatprep.mubr.bf16.mxu0 0
      %559 = vmatmul.mubr.bf16.gmra.mxu0 %v362
      %v560 = vpop.f32.mrf.mxu0
      %v561 = vadd.f32 0.0, %v560
      %v562 = vpop.f32.mrf.mxu0
      %v563 = vpop.f32.mrf.mxu0
      %v564 = vadd.f32 0.0, %v563
      %v565 = vpop.f32.mrf.mxu0
      %566 = vmatprep.mubr.bf16.mxu0 0
      %567 = vmatmul.mubr.bf16.gmra.mxu0 %v363
      %v568 = vpop.f32.mrf.mxu0
      %v569 = vadd.f32 0.0, %v568
      %v570 = vpop.f32.mrf.mxu0
      %v571 = vpop.f32.mrf.mxu0
      %v572 = vadd.f32 0.0, %v571
      %v573 = vpop.f32.mrf.mxu0
      %574 = vmatprep.mubr.bf16.mxu0 0
      %575 = vmatmul.mubr.bf16.gmra.mxu0 %v364
      %v576 = vpop.f32.mrf.mxu0
      %v577 = vadd.f32 0.0, %v576
      %v578 = vpop.f32.mrf.mxu0
      %v579 = vpop.f32.mrf.mxu0
      %v580 = vadd.f32 0.0, %v579
      %v581 = vpop.f32.mrf.mxu0
      %582 = vmatprep.mubr.bf16.mxu0 0
      %583 = vmatmul.mubr.bf16.gmra.mxu0 %v365
      %v584 = vpop.f32.mrf.mxu0
      %v585 = vadd.f32 0.0, %v584
      %v586 = vpop.f32.mrf.mxu0
      %v587 = vpop.f32.mrf.mxu0
      %v588 = vadd.f32 0.0, %v587
      %v589 = vpop.f32.mrf.mxu0
      %590 = vdwg.mxu0
      %v591 = vld [vmem:[%s2] sm:$0x1]
      %v593 = vlaneseq
      %v594 = vshrl.u32 %v593, 7
      %v595 = vsub.s32 0, %v594
      %v596 = vrot.slane %v591, %v595
      %v598 = vmul.f32 %v465, %v596
      %v599 = vmul.f32 %v468, %v596
      %v600 = vmul.f32 %v473, %v596
      %v601 = vmul.f32 %v476, %v596
      %v602 = vmul.f32 %v481, %v596
      %v603 = vmul.f32 %v484, %v596
      %v604 = vmul.f32 %v489, %v596
      %v605 = vmul.f32 %v492, %v596
      %v606 = vmul.f32 %v497, %v596
      %v607 = vmul.f32 %v500, %v596
      %v608 = vmul.f32 %v505, %v596
      %v609 = vmul.f32 %v508, %v596
      %v610 = vmul.f32 %v513, %v596
      %v611 = vmul.f32 %v516, %v596
      %v612 = vmul.f32 %v521, %v596
      %v613 = vmul.f32 %v524, %v596
      %v614 = vmul.f32 %v529, %v596
      %v615 = vmul.f32 %v532, %v596
      %v616 = vmul.f32 %v537, %v596
      %v617 = vmul.f32 %v540, %v596
      %v618 = vmul.f32 %v545, %v596
      %v619 = vmul.f32 %v548, %v596
      %v620 = vmul.f32 %v553, %v596
      %v621 = vmul.f32 %v556, %v596
      %v622 = vmul.f32 %v561, %v596
      %v623 = vmul.f32 %v564, %v596
      %v624 = vmul.f32 %v569, %v596
      %v625 = vmul.f32 %v572, %v596
      %v626 = vmul.f32 %v577, %v596
      %v627 = vmul.f32 %v580, %v596
      %v628 = vmul.f32 %v585, %v596
      %v629 = vmul.f32 %v588, %v596
      %v630 = vld [vmem:[%s3] sm:$0x1]
      %v632 = vlaneseq
      %v633 = vshrl.u32 %v632, 7
      %v634 = vsub.s32 0, %v633
      %v635 = vrot.slane %v630, %v634
      %v637 = vadd.f32 %v598, %v635
      %v638 = vadd.f32 %v599, %v635
      %v639 = vadd.f32 %v600, %v635
      %v640 = vadd.f32 %v601, %v635
      %v641 = vadd.f32 %v602, %v635
      %v642 = vadd.f32 %v603, %v635
      %v643 = vadd.f32 %v604, %v635
      %v644 = vadd.f32 %v605, %v635
      %v645 = vadd.f32 %v606, %v635
      %v646 = vadd.f32 %v607, %v635
      %v647 = vadd.f32 %v608, %v635
      %v648 = vadd.f32 %v609, %v635
      %v649 = vadd.f32 %v610, %v635
      %v650 = vadd.f32 %v611, %v635
      %v651 = vadd.f32 %v612, %v635
      %v652 = vadd.f32 %v613, %v635
      %v653 = vadd.f32 %v614, %v635
      %v654 = vadd.f32 %v615, %v635
      %v655 = vadd.f32 %v616, %v635
      %v656 = vadd.f32 %v617, %v635
      %v657 = vadd.f32 %v618, %v635
      %v658 = vadd.f32 %v619, %v635
      %v659 = vadd.f32 %v620, %v635
      %v660 = vadd.f32 %v621, %v635
      %v661 = vadd.f32 %v622, %v635
      %v662 = vadd.f32 %v623, %v635
      %v663 = vadd.f32 %v624, %v635
      %v664 = vadd.f32 %v625, %v635
      %v665 = vadd.f32 %v626, %v635
      %v666 = vadd.f32 %v627, %v635
      %v667 = vadd.f32 %v628, %v635
      %v668 = vadd.f32 %v629, %v635
      %vm669 = vcmp.gt.f32.partialorder %v637, 0.0
      %vm670 = vcmp.gt.f32.partialorder %v638, 0.0
      %vm671 = vcmp.gt.f32.partialorder %v639, 0.0
      %vm672 = vcmp.gt.f32.partialorder %v640, 0.0
      %vm673 = vcmp.gt.f32.partialorder %v641, 0.0
      %vm674 = vcmp.gt.f32.partialorder %v642, 0.0
      %vm675 = vcmp.gt.f32.partialorder %v643, 0.0
      %vm676 = vcmp.gt.f32.partialorder %v644, 0.0
      %vm677 = vcmp.gt.f32.partialorder %v645, 0.0
      %vm678 = vcmp.gt.f32.partialorder %v646, 0.0
      %vm679 = vcmp.gt.f32.partialorder %v647, 0.0
      %vm680 = vcmp.gt.f32.partialorder %v648, 0.0
      %vm681 = vcmp.gt.f32.partialorder %v649, 0.0
      %vm682 = vcmp.gt.f32.partialorder %v650, 0.0
      %vm683 = vcmp.gt.f32.partialorder %v651, 0.0
      %vm684 = vcmp.gt.f32.partialorder %v652, 0.0
      %vm685 = vcmp.gt.f32.partialorder %v653, 0.0
      %vm686 = vcmp.gt.f32.partialorder %v654, 0.0
      %vm687 = vcmp.gt.f32.partialorder %v655, 0.0
      %vm688 = vcmp.gt.f32.partialorder %v656, 0.0
      %vm689 = vcmp.gt.f32.partialorder %v657, 0.0
      %vm690 = vcmp.gt.f32.partialorder %v658, 0.0
      %vm691 = vcmp.gt.f32.partialorder %v659, 0.0
      %vm692 = vcmp.gt.f32.partialorder %v660, 0.0
      %vm693 = vcmp.gt.f32.partialorder %v661, 0.0
      %vm694 = vcmp.gt.f32.partialorder %v662, 0.0
      %vm695 = vcmp.gt.f32.partialorder %v663, 0.0
      %vm696 = vcmp.gt.f32.partialorder %v664, 0.0
      %vm697 = vcmp.gt.f32.partialorder %v665, 0.0
      %vm698 = vcmp.gt.f32.partialorder %v666, 0.0
      %vm699 = vcmp.gt.f32.partialorder %v667, 0.0
      %vm700 = vcmp.gt.f32.partialorder %v668, 0.0
      %v701 = vmul.f32 %v637, 0.01
      %v702 = vmul.f32 %v638, 0.01
      %v703 = vmul.f32 %v639, 0.01
      %v704 = vmul.f32 %v640, 0.01
      %v705 = vmul.f32 %v641, 0.01
      %v706 = vmul.f32 %v642, 0.01
      %v707 = vmul.f32 %v643, 0.01
      %v708 = vmul.f32 %v644, 0.01
      %v709 = vmul.f32 %v645, 0.01
      %v710 = vmul.f32 %v646, 0.01
      %v711 = vmul.f32 %v647, 0.01
      %v712 = vmul.f32 %v648, 0.01
      %v713 = vmul.f32 %v649, 0.01
      %v714 = vmul.f32 %v650, 0.01
      %v715 = vmul.f32 %v651, 0.01
      %v716 = vmul.f32 %v652, 0.01
      %v717 = vmul.f32 %v653, 0.01
      %v718 = vmul.f32 %v654, 0.01
      %v719 = vmul.f32 %v655, 0.01
      %v720 = vmul.f32 %v656, 0.01
      %v721 = vmul.f32 %v657, 0.01
      %v722 = vmul.f32 %v658, 0.01
      %v723 = vmul.f32 %v659, 0.01
      %v724 = vmul.f32 %v660, 0.01
      %v725 = vmul.f32 %v661, 0.01
      %v726 = vmul.f32 %v662, 0.01
      %v727 = vmul.f32 %v663, 0.01
      %v728 = vmul.f32 %v664, 0.01
      %v729 = vmul.f32 %v665, 0.01
      %v730 = vmul.f32 %v666, 0.01
      %v731 = vmul.f32 %v667, 0.01
      %v732 = vmul.f32 %v668, 0.01
      %v733 = vsel %vm669, %v637, %v701
      %v734 = vsel %vm670, %v638, %v702
      %v735 = vsel %vm671, %v639, %v703
      %v736 = vsel %vm672, %v640, %v704
      %v737 = vsel %vm673, %v641, %v705
      %v738 = vsel %vm674, %v642, %v706
      %v739 = vsel %vm675, %v643, %v707
      %v740 = vsel %vm676, %v644, %v708
      %v741 = vsel %vm677, %v645, %v709
      %v742 = vsel %vm678, %v646, %v710
      %v743 = vsel %vm679, %v647, %v711
      %v744 = vsel %vm680, %v648, %v712
      %v745 = vsel %vm681, %v649, %v713
      %v746 = vsel %vm682, %v650, %v714
      %v747 = vsel %vm683, %v651, %v715
      %v748 = vsel %vm684, %v652, %v716
      %v749 = vsel %vm685, %v653, %v717
      %v750 = vsel %vm686, %v654, %v718
      %v751 = vsel %vm687, %v655, %v719
      %v752 = vsel %vm688, %v656, %v720
      %v753 = vsel %vm689, %v657, %v721
      %v754 = vsel %vm690, %v658, %v722
      %v755 = vsel %vm691, %v659, %v723
      %v756 = vsel %vm692, %v660, %v724
      %v757 = vsel %vm693, %v661, %v725
      %v758 = vsel %vm694, %v662, %v726
      %v759 = vsel %vm695, %v663, %v727
      %v760 = vsel %vm696, %v664, %v728
      %v761 = vsel %vm697, %v665, %v729
      %v762 = vsel %vm698, %v666, %v730
      %v763 = vsel %vm699, %v667, %v731
      %v764 = vsel %vm700, %v668, %v732
      %765 = vst [vmem:[%s235] sm:$0xff] %v733
      %766 = vst [vmem:[%s235 + $0x8] sm:$0xff] %v734
      %767 = vst [vmem:[%s235 + $0x10] sm:$0xff] %v735
      %768 = vst [vmem:[%s235 + $0x18] sm:$0xff] %v736
      %769 = vst [vmem:[%s235 + $0x20] sm:$0xff] %v737
      %770 = vst [vmem:[%s235 + $0x28] sm:$0xff] %v738
      %771 = vst [vmem:[%s235 + $0x30] sm:$0xff] %v739
      %772 = vst [vmem:[%s235 + $0x38] sm:$0xff] %v740
      %773 = vst [vmem:[%s235 + $0x40] sm:$0xff] %v741
      %774 = vst [vmem:[%s235 + $0x48] sm:$0xff] %v742
      %775 = vst [vmem:[%s235 + $0x50] sm:$0xff] %v743
      %776 = vst [vmem:[%s235 + $0x58] sm:$0xff] %v744
      %777 = vst [vmem:[%s235 + $0x60] sm:$0xff] %v745
      %778 = vst [vmem:[%s235 + $0x68] sm:$0xff] %v746
      %779 = vst [vmem:[%s235 + $0x70] sm:$0xff] %v747
      %780 = vst [vmem:[%s235 + $0x78] sm:$0xff] %v748
      %781 = vst [vmem:[%s235 + $0x80] sm:$0xff] %v749
      %782 = vst [vmem:[%s235 + $0x88] sm:$0xff] %v750
      %783 = vst [vmem:[%s235 + $0x90] sm:$0xff] %v751
      %784 = vst [vmem:[%s235 + $0x98] sm:$0xff] %v752
      %785 = vst [vmem:[%s235 + $0xa0] sm:$0xff] %v753
      %786 = vst [vmem:[%s235 + $0xa8] sm:$0xff] %v754
      %787 = vst [vmem:[%s235 + $0xb0] sm:$0xff] %v755
      %788 = vst [vmem:[%s235 + $0xb8] sm:$0xff] %v756
      %789 = vst [vmem:[%s235 + $0xc0] sm:$0xff] %v757
      %790 = vst [vmem:[%s235 + $0xc8] sm:$0xff] %v758
      %791 = vst [vmem:[%s235 + $0xd0] sm:$0xff] %v759
      %792 = vst [vmem:[%s235 + $0xd8] sm:$0xff] %v760
      %793 = vst [vmem:[%s235 + $0xe0] sm:$0xff] %v761
      %794 = vst [vmem:[%s235 + $0xe8] sm:$0xff] %v762
      %795 = vst [vmem:[%s235 + $0xf0] sm:$0xff] %v763
      %796 = vst [vmem:[%s235 + $0xf8] sm:$0xff] %v764
      %s797 = smul.u32 32, %s20
      %p798 = scmp.lt.s32.totalorder %s19, 1
      %s799 = scalar_select %p798, %s19, 1
      %p800 = scmp.lt.s32.totalorder %s797, 31
      %s801 = scalar_select %p800, %s797, 31
      %s802 = smul.addr %s799, 32
      %s803 = sadd.s32 %s801, %s802
      %s804 = smul.addr %s803, 8
      %s805 = scalar_lea.vmem %s4, %s804
      // Predicated region
      $region37: #{conv_block_forward.1} parent=35 // pred_check
        %p806 = pneg %p138
      $region38: #{conv_block_forward.1} parent=35 // pred_check_branch
        %808 = sbr.rel (%p806) target = $region40
      $region39: #{conv_block_forward.1} parent=35 // pred_region
        %s809 = smul.u32 32, %s20
      $region40: #{conv_block_forward.1} parent=35 // pred_fallthru
        _
    $region36: #{conv_block_forward.1} parent=5 // pred_fallthru
      _
    %p810 = scmp.le.s32.totalorder 2, %s10
    // Predicated region
    $region41: #{conv_block_forward.1} parent=5 // pred_check
      %p811 = pneg %p810
    $region42: #{conv_block_forward.1} parent=5 // pred_check_branch
      %813 = sbr.rel (%p811) target = $region44
    $region43: #{conv_block_forward.1} parent=5 // pred_region
      %s814 = ssub.s32 %s10, 2
      // Predicated region
      $region45: #{conv_block_forward.1} parent=43 // pred_check
        %p815 = pneg %p144
      $region46: #{conv_block_forward.1} parent=43 // pred_check_branch
        %817 = sbr.rel (%p815) target = $region48
      $region47: #{conv_block_forward.1} parent=43 // pred_region
        %s818 = smul.u32 32, %s22
        %p819 = scmp.lt.s32.totalorder %s21, 1
        %s820 = scalar_select %p819, %s21, 1
        %p821 = scmp.lt.s32.totalorder %s818, 31
        %s822 = scalar_select %p821, %s818, 31
        %s823 = smul.addr %s820, 32
        %s824 = sadd.s32 %s822, %s823
        %s825 = smul.addr %s824, 8
        %s826 = scalar_lea.vmem %s4, %s825
      $region48: #{conv_block_forward.1} parent=43 // pred_fallthru
        _
    $region44: #{conv_block_forward.1} parent=5 // pred_fallthru
      _
  $region6: #{conv_block_forward.1} parent=0 // loop_footer
    %s14 = sadd.s32 1, %s10
  $region7: #{conv_block_forward.1} parent=0 // loop_footer_branch
    %9 = sbr.rel target = $region3
  $region8: #{conv_block_forward.1} parent=0 // loop_exit
    _

</llo_original>
